<compile_context>
chip_gen: v7x
topology: tpu7x:2x2x1
jax: 0.10.0
libtpu: 0.0.40
codegen_flags: <defaults>
</compile_context>

<pallas_src>
import functools

import jax
import jax.numpy as jnp
from jax.experimental import pallas as pl
from jax.experimental.pallas import tpu as pltpu


def _round_up(x: int, m: int) -> int:
    return ((x + m - 1) // m) * m


def _physical_vmem_bytes() -> int:
    try:
        return int(pltpu.get_tpu_info().vmem_capacity_bytes)
    except Exception:
        return 64 * 1024 * 1024  # conservative fallback (v7x per-TC VMEM)


def _num_tensorcores() -> int:
    try:
        if "v7" in jax.devices()[0].device_kind.lower():
            return 2
    except Exception:
        pass
    return 1


def _vmem_estimate(tt: int, tn: int, E: int, D: int) -> int:
    """Per-step VMEM footprint: pipeline buffers + in-kernel intermediates."""
    x_blk = tt * tn * E * 4      # f32 input block (double-buffered)
    w_blk = E * D * 2            # bf16 projection (double-buffered)
    o_blk = tn * D * 4           # f32 output block (double-buffered)
    acc = tn * D * 4             # accumulator scratch
    x_cast = tt * tn * E * 2     # in-kernel bf16 cast of x
    feats = tt * tn * D * 4      # in-kernel f32 matmul result
    return 2 * x_blk + 2 * w_blk + 2 * o_blk + acc + x_cast + feats


def _choose_tiles(T: int, N: int, E: int, D: int, budget: int):
    """Pick (tt, tn): template chunk and N-tile rows, fitting the VMEM budget."""
    n_base = _round_up(max(N, 1), 8)
    tn = min(512, n_base)
    # On 2-TC chips (v7x) give the "parallel" N axis >= 2 steps so both cores work.
    if _num_tensorcores() >= 2 and n_base > 16:
        tn = min(tn, _round_up(pl.cdiv(n_base, 2), 8))
    while True:
        tt = max(1, T)
        while tt > 1 and _vmem_estimate(tt, tn, E, D) > budget:
            tt = max(1, tt // 2)
        if _vmem_estimate(tt, tn, E, D) <= budget or tn <= 8:
            return tt, tn
        tn = max(8, _round_up(tn // 2, 8))


def _prompt_ensemble_kernel(x_ref, w_ref, out_ref, acc_ref, *, inv_t):
    """Grid = (N-tiles [parallel], template-chunks [arbitrary/reduction]).

    x_ref  : (tt, tn, E) f32 pooled encoder outputs (template chunk x N-tile)
    w_ref  : (E, D)      bf16 CLIP text projection
    out_ref: (tn, D)     f32 ensembled, L2-normalized text features
    acc_ref: (tn, D)     f32 sum of per-template normalized features
    """
    tj = pl.program_id(1)

    @pl.when(tj == 0)
    def _():
        acc_ref[...] = jnp.zeros_like(acc_ref)

    # Cast the big operand to bf16 in-kernel (no wrapper HBM pad/cast pass);
    # MXU batched contraction with f32 accumulation — no reshapes.
    x = x_ref[...].astype(jnp.bfloat16)
    feats = jax.lax.dot_general(
        x,
        w_ref[...],
        dimension_numbers=(((2,), (0,)), ((), ())),
        preferred_element_type=jnp.float32,
    )  # (tt, tn, D)

    # Per-row L2 normalize (rsqrt -> EUP). Eps guards zero-padded rows/templates.
    sq = jnp.sum(feats * feats, axis=-1, keepdims=True)
    feats = feats * jax.lax.rsqrt(jnp.maximum(sq, 1e-30))

    # Accumulate the template-ensemble sum.
    acc_ref[...] += jnp.sum(feats, axis=0)

    @pl.when(tj == pl.num_programs(1) - 1)
    def _():
        m = acc_ref[...] * inv_t
        sq2 = jnp.sum(m * m, axis=-1, keepdims=True)
        out_ref[...] = (m * jax.lax.rsqrt(jnp.maximum(sq2, 1e-30))).astype(
            out_ref.dtype
        )


def prompt_extractor_forward(pooled_enc: jax.Array, text_proj: jax.Array) -> jax.Array:
    """pooled_enc: (T, N, E) f32, text_proj: (E, D) f32 -> (N, D) f32."""
    T, N, E = pooled_enc.shape
    E2, D = text_proj.shape
    assert E == E2

    phys = _physical_vmem_bytes()
    budget = int(phys * 0.6)
    tt, tn = _choose_tiles(T, N, E, D, budget)

    n_pad = _round_up(N, tn)
    t_pad = _round_up(T, tt)

    # Pad only when strictly needed (zero rows/templates contribute nothing;
    # eps in the kernel keeps them NaN-free). E / D are left un-padded: blocks
    # span the full dim there, and real CLIP widths are already 128-aligned.
    x = pooled_enc
    if (t_pad, n_pad) != (T, N):
        x = jnp.pad(x, ((0, t_pad - T), (0, n_pad - N), (0, 0)))
    # Small projection kept persistently in bf16 (halves its VMEM residency);
    # the big operand stays f32 in HBM and is cast in-kernel.
    w = text_proj.astype(jnp.bfloat16)

    grid = (n_pad // tn, t_pad // tt)

    est_vmem = _vmem_estimate(tt, tn, E, D)
    vmem_limit = None
    if est_vmem > 30 * 1024 * 1024:
        # Never ask for more than ~85% of physical VMEM (v7x has only 64 MiB).
        vmem_limit = min(int(est_vmem * 1.3), int(phys * 0.85))

    cost = pl.CostEstimate(
        flops=2 * t_pad * n_pad * E * D,
        transcendentals=t_pad * n_pad + n_pad,
        bytes_accessed=x.size * 4 + w.size * 2 + n_pad * D * 4,
    )

    kernel = functools.partial(_prompt_ensemble_kernel, inv_t=1.0 / T)

    out = pl.pallas_call(
        kernel,
        out_shape=jax.ShapeDtypeStruct((n_pad, D), jnp.float32),
        grid_spec=pltpu.PrefetchScalarGridSpec(
            num_scalar_prefetch=0,
            grid=grid,
            in_specs=[
                # one template chunk of one N-tile
                pl.BlockSpec((tt, tn, E), lambda i, j: (j, i, 0)),
                # projection: same block every step (constant index_map -> no re-DMA)
                pl.BlockSpec((E, D), lambda i, j: (0, 0)),
            ],
            out_specs=pl.BlockSpec((tn, D), lambda i, j: (i, 0)),
            scratch_shapes=[pltpu.VMEM((tn, D), jnp.float32)],
        ),
        compiler_params=pltpu.CompilerParams(
            dimension_semantics=("parallel", "arbitrary"),
            vmem_limit_bytes=vmem_limit,
        ),
        cost_estimate=cost,
    )(x, w)

    return out[:N]


def _reference(pooled_enc, text_proj):
    feats = jnp.einsum("tne,ed->tnd", pooled_enc, text_proj)
    feats = feats / jnp.linalg.norm(feats, axis=-1, keepdims=True)
    mean_feats = feats.mean(axis=0)
    return mean_feats / jnp.linalg.norm(mean_feats, axis=-1, keepdims=True)


if __name__ == "__main__":
    # Small, deterministic synthetic setup (no checkpoint load):
    #   T = 4 prompt templates, N = 8 nouns, E = 32 encoder width, D = 32 embed dim
    T, N, E, D = 4, 8, 32, 32
    key = jax.random.PRNGKey(0)
    k_x, k_w = jax.random.split(key)

    # Deterministic stand-in for clip_model.encode_text pooled (EOT-token) outputs.
    pooled_enc = jax.random.normal(k_x, (T, N, E), dtype=jnp.float32)
    # Deterministic stand-in for clip_model.text_projection.
    text_proj = jax.random.normal(k_w, (E, D), dtype=jnp.float32) * (E ** -0.5)

    out = prompt_extractor_forward(pooled_enc, text_proj)
    out = jax.block_until_ready(out)

    ref = _reference(pooled_enc, text_proj)
    assert out.shape == (N, D)
    # bf16 operands (f32 accumulate) -> slightly looser tolerance than pure f32.
    assert jnp.allclose(out, ref, atol=1e-2, rtol=1e-2), float(
        jnp.max(jnp.abs(out - ref))
    )
    print("KERNEL_OK")
</pallas_src>

<mosaic_0001>
module attributes {stable_mosaic.version = 11 : i64} {
  func.func @_prompt_ensemble_kernel(%arg0: i32, %arg1: i32, %arg2: memref<4x8x32xf32, #tpu.memory_space<vmem>>, %arg3: memref<32x32xbf16, #tpu.memory_space<vmem>>, %arg4: memref<8x32xf32, #tpu.memory_space<vmem>>, %arg5: memref<8x32xf32, #tpu.memory_space<vmem>>) attributes {dimension_semantics = [#tpu.dimension_semantics<parallel>, #tpu.dimension_semantics<arbitrary>], iteration_bounds = array<i64: 1, 1>, scalar_prefetch = 0 : i64, scratch_operands = 1 : i64, tpu.core_type = #tpu.core_type<tc>, window_params = [{transform_indices = @transform_0, window_bounds = array<i64: 4, 8, 32>}, {pipeline_mode = #tpu.pipeline_mode<synchronous>, transform_indices = @transform_1, window_bounds = array<i64: 32, 32>}, {transform_indices = @transform_2, window_bounds = array<i64: 8, 32>}]} {
    %c0_i32 = arith.constant 0 : i32
    %0 = arith.cmpi eq, %arg1, %c0_i32 : i32
    %1 = arith.extui %0 : i1 to i32
    %c0_i32_0 = arith.constant 0 : i32
    %2 = arith.cmpi ne, %1, %c0_i32_0 : i32
    scf.if %2 {
      %cst_14 = arith.constant 0.000000e+00 : f32
      %22 = vector.broadcast %cst_14 : f32 to vector<8x32xf32>
      %c0_15 = arith.constant 0 : index
      %c0_16 = arith.constant 0 : index
      %23 = vector.load %arg5[%c0_15, %c0_16] : memref<8x32xf32, #tpu.memory_space<vmem>>, vector<8x32xf32>
      tpu.vector_store %arg5[%c0_15, %c0_16], %22 {strides = array<i32>} : memref<8x32xf32, #tpu.memory_space<vmem>>, vector<8x32xf32>,
    } else {
    }
    %c0 = arith.constant 0 : index
    %c0_1 = arith.constant 0 : index
    %c0_2 = arith.constant 0 : index
    %3 = vector.load %arg2[%c0, %c0_1, %c0_2] : memref<4x8x32xf32, #tpu.memory_space<vmem>>, vector<4x8x32xf32>
    %4 = arith.truncf %3 : vector<4x8x32xf32> to vector<4x8x32xbf16>
    %c0_3 = arith.constant 0 : index
    %c0_4 = arith.constant 0 : index
    %5 = vector.load %arg3[%c0_3, %c0_4] : memref<32x32xbf16, #tpu.memory_space<vmem>>, vector<32x32xbf16>
    %cst = arith.constant dense<0.000000e+00> : vector<4x8x32xf32>
    %6 = tpu.matmul %4, %5, %cst {dimension_numbers = #tpu.dot_dimension_numbers<[2], [0], [0, 1], [1], [0, 0, 0, 1, 1, 1], [], []>} : vector<4x8x32xbf16>, vector<32x32xbf16>, vector<4x8x32xf32> -> vector<4x8x32xf32>
    %7 = arith.mulf %6, %6 : vector<4x8x32xf32>
    %cst_5 = arith.constant dense<0.000000e+00> : vector<4x8xf32>
    %8 = vector.multi_reduction <add>, %7, %cst_5 [2] : vector<4x8x32xf32> to vector<4x8xf32>
    %9 = vector.shape_cast %8 : vector<4x8xf32> to vector<4x8x1xf32>
    %cst_6 = arith.constant 1.000000e-30 : f32
    %10 = vector.broadcast %cst_6 : f32 to vector<4x8x1xf32>
    %11 = arith.maximumf %9, %10 : vector<4x8x1xf32>
    %12 = math.rsqrt %11 : vector<4x8x1xf32>
    %13 = vector.broadcast %12 : vector<4x8x1xf32> to vector<4x8x32xf32>
    %14 = arith.mulf %6, %13 : vector<4x8x32xf32>
    %c0_7 = arith.constant 0 : index
    %c0_8 = arith.constant 0 : index
    %15 = vector.load %arg5[%c0_7, %c0_8] : memref<8x32xf32, #tpu.memory_space<vmem>>, vector<8x32xf32>
    %cst_9 = arith.constant dense<0.000000e+00> : vector<8x32xf32>
    %16 = vector.multi_reduction <add>, %14, %cst_9 [0] : vector<4x8x32xf32> to vector<8x32xf32>
    %17 = arith.addf %15, %16 : vector<8x32xf32>
    %c0_10 = arith.constant 0 : index
    %c0_11 = arith.constant 0 : index
    %18 = vector.load %arg5[%c0_10, %c0_11] : memref<8x32xf32, #tpu.memory_space<vmem>>, vector<8x32xf32>
    tpu.vector_store %arg5[%c0_10, %c0_11], %17 {strides = array<i32>} : memref<8x32xf32, #tpu.memory_space<vmem>>, vector<8x32xf32>,
    %c0_i32_12 = arith.constant 0 : i32
    %19 = arith.cmpi eq, %arg1, %c0_i32_12 : i32
    %20 = arith.extui %19 : i1 to i32
    %c0_i32_13 = arith.constant 0 : i32
    %21 = arith.cmpi ne, %20, %c0_i32_13 : i32
    scf.if %21 {
      %c0_14 = arith.constant 0 : index
      %c0_15 = arith.constant 0 : index
      %22 = vector.load %arg5[%c0_14, %c0_15] : memref<8x32xf32, #tpu.memory_space<vmem>>, vector<8x32xf32>
      %cst_16 = arith.constant 2.500000e-01 : f32
      %23 = vector.broadcast %cst_16 : f32 to vector<8x32xf32>
      %24 = arith.mulf %22, %23 : vector<8x32xf32>
      %25 = arith.mulf %24, %24 : vector<8x32xf32>
      %cst_17 = arith.constant dense<0.000000e+00> : vector<8xf32>
      %26 = vector.multi_reduction <add>, %25, %cst_17 [1] : vector<8x32xf32> to vector<8xf32>
      %27 = vector.shape_cast %26 : vector<8xf32> to vector<8x1xf32>
      %cst_18 = arith.constant 1.000000e-30 : f32
      %28 = vector.broadcast %cst_18 : f32 to vector<8x1xf32>
      %29 = arith.maximumf %27, %28 : vector<8x1xf32>
      %30 = math.rsqrt %29 : vector<8x1xf32>
      %31 = vector.broadcast %30 : vector<8x1xf32> to vector<8x32xf32>
      %32 = arith.mulf %24, %31 : vector<8x32xf32>
      %c0_19 = arith.constant 0 : index
      %c0_20 = arith.constant 0 : index
      %33 = vector.load %arg4[%c0_19, %c0_20] : memref<8x32xf32, #tpu.memory_space<vmem>>, vector<8x32xf32>
      tpu.vector_store %arg4[%c0_19, %c0_20], %32 {strides = array<i32>} : memref<8x32xf32, #tpu.memory_space<vmem>>, vector<8x32xf32>,
    } else {
    }
    return
  }
  func.func @transform_0(%arg0: i32, %arg1: i32) -> (i32, i32, i32) {
    %c0_i32 = arith.constant 0 : i32
    %c0_i32_0 = arith.constant 0 : i32
    return %arg1, %arg0, %c0_i32 : i32, i32, i32
  }
  func.func @transform_1(%arg0: i32, %arg1: i32) -> (i32, i32) {
    %c0_i32 = arith.constant 0 : i32
    %c0_i32_0 = arith.constant 0 : i32
    %c0_i32_1 = arith.constant 0 : i32
    return %c0_i32, %c0_i32_0 : i32, i32
  }
  func.func @transform_2(%arg0: i32, %arg1: i32) -> (i32, i32) {
    %c0_i32 = arith.constant 0 : i32
    %c0_i32_0 = arith.constant 0 : i32
    return %arg0, %c0_i32 : i32, i32
  }
}

</mosaic_0001>

<llo_original>
// kernel: tpu_custom_call.1
$region0: #{tpu_custom_call.1}
  #allocation0 [shape = 'u32[]', space=smem, size = 0x4, offset = 0x4, fixed_abs, tag = 'smem constant byte address 0x4 - core index']
  #allocation1 [shape = 'u32[144,128]{1,0:T(1,128)}', space=vmem, size = 0x12000, scoped, tag = 'internal scratch']
  #allocation2 [shape = 'f32[8,32]{1,0:T(8,128)}', space=vmem, size = 0x1000, scoped, tag = 'scratch operand']
  %s0 = inlined_call_operand.hbm [shape: f32[4,8,32], index: 0, kind: input, shape index: {}]
  %s1 = inlined_call_operand.hbm [shape: bf16[32,32], index: 1, kind: input, shape index: {}]
  %s2 = inlined_call_operand.hbm [shape: f32[8,32], index: 2, kind: output, shape index: {}]
  %s3 = sld [smem:[#allocation0]]
  $region34: #{tpu_custom_call.1} parent=0
    _
  %s5 = ssub.s32 1, %s3
  %s6 = scalar_select 0, %s5, %s3
  $region1: #{tpu_custom_call.1} parent=0
    #allocation3 [shape = 'u8[16384]{0}', space=vmem, size = 0x4000, scoped, tag = 'input window, operand 0, single buffered']
    #allocation4 [shape = 's32[1]{0}', space=sflag, size = 0x4, scoped, tag = 'scoped memory for tpu_custom_call.1']
    #allocation5 [shape = 's32[1]{0}', space=sflag, size = 0x4, scoped, tag = 'scoped memory for tpu_custom_call.1']
    #allocation6 [shape = 'u8[8192]{0}', space=vmem, size = 0x2000, scoped, tag = 'input window, operand 1, single buffered']
    #allocation7 [shape = 's32[1]{0}', space=sflag, size = 0x4, scoped, tag = 'scoped memory for tpu_custom_call.1']
    #allocation8 [shape = 'u8[4096]{0}', space=vmem, size = 0x1000, scoped, tag = 'output window, operand 0, single buffered']
    %7 = vsyncpa [#allocation4], 0
    %8 = vsyncpa [#allocation7], 0
    %9 = vsyncpa [#allocation5], 0
    // Predicated region
    $region2: #{tpu_custom_call.1} parent=1 // pred_check
      _
    $region3: #{tpu_custom_call.1} parent=1 // pred_check_branch
      %11 = sbr.rel (0) target = $region5
    $region4: #{tpu_custom_call.1} parent=1 // pred_region
      %s13 = ssub.s32 512, 512
      %14 = vsyncadd [#allocation4], %s13
      %s15 = sshll.u32 [#allocation3], 4
      %s16 = int_to_ptr.vmem [resolvable:$true] %s15
      %21 = dma.hbm_to_vmem [thread:$0]  %s0, 512, %s16, [#allocation4], 128, 128, 8
    $region5: #{tpu_custom_call.1} parent=1 // pred_fallthru
      _
    // Predicated region
    $region6: #{tpu_custom_call.1} parent=1 // pred_check
      _
    $region7: #{tpu_custom_call.1} parent=1 // pred_check_branch
      %23 = sbr.rel (0) target = $region9
    $region8: #{tpu_custom_call.1} parent=1 // pred_region
      %s25 = ssub.s32 256, 256
      %26 = vsyncadd [#allocation7], %s25
      %s27 = sshll.u32 [#allocation6], 4
      %s28 = int_to_ptr.vmem [resolvable:$true] %s27
      %33 = dma.hbm_to_vmem [thread:$0]  %s1, 256, %s28, [#allocation7], 64, 64, 4
    $region9: #{tpu_custom_call.1} parent=1 // pred_fallthru
      _
    // Predicated region
    $region10: #{tpu_custom_call.1} parent=1 // pred_check
      _
    $region11: #{tpu_custom_call.1} parent=1 // pred_check_branch
      %35 = sbr.rel (0) target = $region13
    $region12: #{tpu_custom_call.1} parent=1 // pred_region
      %36 = dma.done [#allocation4], 512
    $region13: #{tpu_custom_call.1} parent=1 // pred_fallthru
      _
    // Predicated region
    $region14: #{tpu_custom_call.1} parent=1 // pred_check
      _
    $region15: #{tpu_custom_call.1} parent=1 // pred_check_branch
      %38 = sbr.rel (0) target = $region17
    $region16: #{tpu_custom_call.1} parent=1 // pred_region
      %39 = dma.done [#allocation7], 256
    $region17: #{tpu_custom_call.1} parent=1 // pred_fallthru
      _
    %p41 = scmp.eq.s32.totalorder 0, 0
    // Predicated region
    $region18: #{tpu_custom_call.1} parent=1 // pred_check
      %p42 = pneg %p41
    $region19: #{tpu_custom_call.1} parent=1 // pred_check_branch
      %44 = sbr.rel (%p42) target = $region21
    $region20: #{tpu_custom_call.1} parent=1 // pred_region
      %vm45 = vcmask 261120
      %46 = vst.msk [vmem:[#allocation2] sm:$0xff] %vm45, 0.0
    $region21: #{tpu_custom_call.1} parent=1 // pred_fallthru
      _
    %v47 = vld [vmem:[#allocation3] sm:$0xff]
    %v48 = vld [vmem:[#allocation3 + $0x8] sm:$0xff]
    %v49 = vld [vmem:[#allocation3 + $0x10] sm:$0xff]
    %v50 = vld [vmem:[#allocation3 + $0x18] sm:$0xff]
    %v51 = vpack.c.bf16 %v47, %v47
    %v52 = vpack.c.bf16 %v48, %v48
    %v53 = vpack.c.bf16 %v49, %v49
    %v54 = vpack.c.bf16 %v50, %v50
    %v55 = vld [vmem:[#allocation6] sm:$0xf]
    %v56 = vld [vmem:[#allocation6 + $0x4] sm:$0xf]
    %v57 = vld [vmem:[#allocation6 + $0x8] sm:$0xf]
    %v58 = vld [vmem:[#allocation6 + $0xc] sm:$0xf]
    %v63 = vunpack.c.l.b16 %v51
    %v64 = vunpack.c.l.b16 %v52
    %v65 = vunpack.c.l.b16 %v53
    %v66 = vunpack.c.l.b16 %v54
    %v67 = vpack.c.b16 %v64, %v63
    %v68 = vpack.c.b16 %v66, %v65
    %v73 = vunpack.c.l.b16 %v55
    %v74 = vunpack.c.l.b16 %v56
    %v75 = vunpack.c.l.b16 %v57
    %v76 = vunpack.c.l.b16 %v58
    %v77 = vpack.c.b16 %v74, %v73
    %v78 = vpack.c.b16 %v76, %v75
    %vm81 = vcmask 261120
    %v83 = vsel %vm81, %v67, 0
    %v86 = vsel %vm81, %v68, 0
    %88 = vmatprep.subr.bf16.mxu0 0
    %89 = vmatpush1.bf16.msra.mxu0 %v77
    %90 = vmatprep.subr.bf16.mxu0 0
    %91 = vmatpush1.bf16.msra.mxu0 %v78
    %92 = vmatprep.subr.bf16.mxu0 0
    %93 = vmatpush1.bf16.msra.mxu0 0
    %94 = vmatprep.subr.bf16.mxu0 0
    %95 = vmatpush1.bf16.msra.mxu0 0
    %96 = vmatprep.subr.bf16.mxu0 0
    %97 = vmatpush1.bf16.msra.mxu0 0
    %98 = vmatprep.subr.bf16.mxu0 0
    %99 = vmatpush1.bf16.msra.mxu0 0
    %100 = vmatprep.subr.bf16.mxu0 0
    %101 = vmatpush1.bf16.msra.mxu0 0
    %102 = vmatprep.subr.bf16.mxu0 0
    %103 = vmatpush1.bf16.msra.mxu0 0
    %104 = vmatprep.subr.bf16.mxu0 0
    %105 = vmatpush1.bf16.msra.mxu0 0
    %106 = vmatprep.subr.bf16.mxu0 0
    %107 = vmatpush1.bf16.msra.mxu0 0
    %108 = vmatprep.subr.bf16.mxu0 0
    %109 = vmatpush1.bf16.msra.mxu0 0
    %110 = vmatprep.subr.bf16.mxu0 0
    %111 = vmatpush1.bf16.msra.mxu0 0
    %112 = vmatprep.subr.bf16.mxu0 0
    %113 = vmatpush1.bf16.msra.mxu0 0
    %114 = vmatprep.subr.bf16.mxu0 0
    %115 = vmatpush1.bf16.msra.mxu0 0
    %116 = vmatprep.subr.bf16.mxu0 0
    %117 = vmatpush1.bf16.msra.mxu0 0
    %118 = vmatprep.subr.bf16.mxu0 0
    %119 = vmatpush1.bf16.msra.mxu0 0
    %120 = vmatprep.mubr.bf16.mxu0 0
    %121 = vmatmul.mubr.bf16.gmra.mrb[0].mxu0 %v83
    %v122 = vpop.f32.mrb[0].mxu0
    %v123 = vadd.f32 0.0, %v122
    %v124 = vpop.f32.mrb[0].mxu0
    %v125 = vpop.f32.mrb[0].mxu0
    %v126 = vadd.f32 0.0, %v125
    %v127 = vpop.f32.mrb[0].mxu0
    %128 = vmatprep.mubr.bf16.mxu0 0
    %129 = vmatmul.mubr.bf16.gmra.mrb[0].mxu0 %v86
    %v130 = vpop.f32.mrb[0].mxu0
    %v131 = vadd.f32 0.0, %v130
    %v132 = vpop.f32.mrb[0].mxu0
    %v133 = vpop.f32.mrb[0].mxu0
    %v134 = vadd.f32 0.0, %v133
    %v135 = vpop.f32.mrb[0].mxu0
    %136 = vdwg.mxu0
    %v137 = vmul.f32 %v123, %v123
    %v138 = vmul.f32 %v126, %v126
    %v139 = vmul.f32 %v131, %v131
    %v140 = vmul.f32 %v134, %v134
    %v141 = vsel %vm81, %v137, 0.0
    %142 = vadd.xlane.f32.xlu0 %v141
    %v143 = vpop.xlane.xlu0 %142
    %v144 = vsel %vm81, %v138, 0.0
    %145 = vadd.xlane.f32.xlu0 %v144
    %v146 = vpop.xlane.xlu0 %145
    %v147 = vsel %vm81, %v139, 0.0
    %148 = vadd.xlane.f32.xlu0 %v147
    %v149 = vpop.xlane.xlu0 %148
    %v150 = vsel %vm81, %v140, 0.0
    %151 = vadd.xlane.f32.xlu0 %v150
    %v152 = vpop.xlane.xlu0 %151
    %v153 = vmax.f32 %v143, 1e-30
    %v154 = vmax.f32 %v146, 1e-30
    %v155 = vmax.f32 %v149, 1e-30
    %v156 = vmax.f32 %v152, 1e-30
    %v157 = vrsqrt.pop %v153
    %v158 = vrsqrt.pop %v154
    %v159 = vrsqrt.pop %v155
    %v160 = vrsqrt.pop %v156
    %v161 = vmul.f32 %v123, %v157
    %v162 = vmul.f32 %v126, %v158
    %v163 = vmul.f32 %v131, %v159
    %v164 = vmul.f32 %v134, %v160
    %v165 = vld [vmem:[#allocation2] sm:$0xff]
    %v166 = vsel %vm81, %v161, 0.0
    %v167 = vsel %vm81, %v162, 0.0
    %v168 = vadd.f32 %v166, %v167
    %v169 = vsel %vm81, %v163, 0.0
    %v170 = vadd.f32 %v168, %v169
    %v171 = vsel %vm81, %v164, 0.0
    %v172 = vadd.f32 %v170, %v171
    %v173 = vadd.f32 %v165, %v172
    %174 = vst.msk [vmem:[#allocation2] sm:$0xff] %vm81, %v173
    // Predicated region
    $region22: #{tpu_custom_call.1} parent=1 // pred_check
      %p175 = pneg %p41
    $region23: #{tpu_custom_call.1} parent=1 // pred_check_branch
      %177 = sbr.rel (%p175) target = $region25
    $region24: #{tpu_custom_call.1} parent=1 // pred_region
      %v178 = vld [vmem:[#allocation2] sm:$0xff]
      %v179 = vmul.f32 %v178, 0.25
      %v180 = vmul.f32 %v179, %v179
      %v181 = vsel %vm81, %v180, 0.0
      %182 = vadd.xlane.f32.xlu0 %v181
      %v183 = vpop.xlane.xlu0 %182
      %v184 = vmax.f32 %v183, 1e-30
      %v185 = vrsqrt.pop %v184
      %v186 = vmul.f32 %v179, %v185
      %187 = vst.msk [vmem:[#allocation8] sm:$0xff] %vm81, %v186
    $region25: #{tpu_custom_call.1} parent=1 // pred_fallthru
      _
    // Predicated region
    $region26: #{tpu_custom_call.1} parent=1 // pred_check
      _
    $region27: #{tpu_custom_call.1} parent=1 // pred_check_branch
      %189 = sbr.rel (0) target = $region29
    $region28: #{tpu_custom_call.1} parent=1 // pred_region
      %s191 = ssub.s32 128, 128
      %192 = vsyncadd [#allocation5], %s191
      %s194 = sshll.u32 [#allocation8], 4
      %s195 = int_to_ptr.vmem [resolvable:$true] %s194
      %197 = dma.vmem_to_hbm [thread:$0]  %s195, 128, %s2, [#allocation5]
    $region29: #{tpu_custom_call.1} parent=1 // pred_fallthru
      _
    // Predicated region
    $region30: #{tpu_custom_call.1} parent=1 // pred_check
      _
    $region31: #{tpu_custom_call.1} parent=1 // pred_check_branch
      %199 = sbr.rel (0) target = $region33
    $region32: #{tpu_custom_call.1} parent=1 // pred_region
      %200 = dma.done [#allocation5], 128
    $region33: #{tpu_custom_call.1} parent=1 // pred_fallthru
      _
    %201 = vsyncpa [#allocation4], 1
    %202 = vsyncpa [#allocation7], 1
    %203 = vsyncpa [#allocation5], 1

</llo_original>
